<compile_context>
chip_gen: v7x
topology: tpu7x:2x2x1
jax: 0.10.0
libtpu: 0.0.40
codegen_flags: <defaults>
</compile_context>

<pallas_src>
import functools

import jax
import jax.numpy as jnp
from jax.experimental import pallas as pl
from jax.experimental.pallas import tpu as pltpu

_LANE = 128


def _adversary_kernel(mask_ref, x_ref, attack_ref, invproj_ref, out_ref, *, cast_bf16):
    # Block shapes:
    #   mask_ref   : (1, TM, 1)   int32 (0/1)
    #   x_ref      : (1, TM, TN)  x.dtype
    #   attack_ref : (1, TM, D)   attack dtype (full reduction dim)
    #   invproj_ref: (D, TN)      inv_proj dtype
    #   out_ref    : (1, TM, TN)  x.dtype
    x = x_ref[0]                                              # (TM, TN)
    a = attack_ref[0]                                         # (TM, D)
    w = invproj_ref[...]                                      # (D, TN)
    if cast_bf16:
        # In-kernel cast: keeps the single f32 HBM pass but feeds the MXU bf16
        # operands (big win on v5e where f32 matmul needs ~3x passes).
        a = a.astype(jnp.bfloat16)
        w = w.astype(jnp.bfloat16)
    # unproj[s, d] = sum_n attack[s, n] * inv_proj[n, d]   (MXU, f32 accumulate)
    unproj = jnp.dot(a, w, preferred_element_type=jnp.float32)   # (TM, TN)
    # Select (not mask-multiply): masked-out rows return x exactly, even if the
    # corresponding attack rows hold Inf/NaN (matches torch boolean-index update).
    m = jnp.broadcast_to(mask_ref[0], x.shape) != 0
    out_ref[0] = jnp.where(m, x + unproj.astype(x.dtype), x)


def _vmem_capacity_bytes():
    """Physical VMEM per TensorCore (128 MiB v5e/v6e, 64 MiB v7x)."""
    try:
        cap = getattr(pltpu.get_tpu_info(), "vmem_capacity_bytes", None)
        if cap:
            return int(cap)
    except Exception:
        pass
    return 64 * 1024 * 1024  # conservative fallback (safe on every generation)


def _choose_tiles(S, D, x_itemsize, w_itemsize, vmem_budget, sub_mult):
    """Pick (row_tile, col_tile, d_tiled).

    inv_proj is single-buffered when fully resident (its block index is constant),
    so it counts once against the budget; everything else is double-buffered.
    """
    if D * D * w_itemsize <= vmem_budget // 2 or D <= 2 * _LANE:
        tn, d_tiled = D, False
        resident = D * D * w_itemsize                 # Buffered(1): one copy
    else:
        d_tiled = True
        tn = max(_LANE, (D // 2 // _LANE) * _LANE)
        while tn > 2 * _LANE and 2 * D * tn * w_itemsize > vmem_budget // 2:
            tn = max(_LANE, (tn // 2 // _LANE) * _LANE)
        tn = max(2 * _LANE, tn)                       # >=256 lanes: full v6e/v7x MXU width
        resident = 2 * D * tn * w_itemsize            # double-buffered (index varies with j)
    # Per-row-tile bytes: x + out (x dtype, TN wide), attack (w dtype, D wide), mask;
    # all double-buffered by the pipeline.
    per_row = 2 * (2 * tn * x_itemsize + D * w_itemsize + 4)
    avail = max(vmem_budget - resident, per_row * sub_mult)
    # Resident regime: 512 rows is already ~86% of the HBM roofline.  D-tiled regime:
    # inv_proj is re-streamed once per row tile, so let tm grow as far as VMEM allows.
    cap = S if d_tiled else min(512, S)
    tm = int(min(cap, max(sub_mult, avail // per_row), S))
    tm = max(sub_mult, (tm // sub_mult) * sub_mult) if S > sub_mult else S
    return tm, tn, d_tiled


def whitened_gd_adversary_forward(x, attack, inv_proj, attack_mask, *,
                                  use_bf16=False, row_tile=None, col_tile=None,
                                  vmem_budget_bytes=None, donate_x=False):
    """Functional equivalent of WhitenedGDAdversary.forward.

    x: (B, S, D); attack: (B, S_mask, D), S_mask >= S; inv_proj: (D, D);
    attack_mask: (B, S_mask) bool.  Returns (B, S, D) in x.dtype.
    """
    B, S, D = x.shape
    assert inv_proj.shape == (D, D)
    assert attack.shape[0] == B and attack.shape[2] == D and attack.shape[1] >= S

    x_item = jnp.dtype(x.dtype).itemsize
    w_item = jnp.dtype(attack.dtype).itemsize

    # Generation-aware VMEM budget (~3/4 physical) and scoped limit (~7/8 physical,
    # leaving compiler internal-scratch headroom): 96/112 MiB on v5e/v6e, 48/56 on v7x.
    vmem_cap = _vmem_capacity_bytes()
    if vmem_budget_bytes is None:
        vmem_budget_bytes = vmem_cap * 3 // 4
    vmem_limit = int(min(vmem_cap * 7 // 8,
                         max(32 * 1024 * 1024, vmem_budget_bytes * 4 // 3)))

    # Sub-32-bit dtypes pack rows per sublane: keep tm a multiple of 16 (bf16) / 32 (8-bit).
    sub_mult = max(8, 8 * max(4 // x_item, 4 // w_item))

    tm, tn, _ = _choose_tiles(S, D, x_item, w_item, vmem_budget_bytes, sub_mult)
    if row_tile is not None:
        tm = row_tile
    if col_tile is not None:
        tn = col_tile
    d_tiled = pl.cdiv(D, tn) > 1

    # Tiny (B, S, 1) int32 mask; the big `attack` tensor is neither sliced nor cast in
    # the wrapper (no extra HBM pass) -- only its first ceil(S/tm) row tiles are read.
    # Rows in [S, ceil(S/tm)*tm) of the last partial tile feed the matmul but their
    # outputs are discarded by the partial store (harmless).
    mask_i32 = attack_mask[:, :S].astype(jnp.int32)[:, :, None]

    # inv_proj: single pipeline buffer when fully resident (block index is constant
    # across the whole grid), default double-buffering only when column-tiled.
    if d_tiled:
        invproj_spec = pl.BlockSpec((D, tn), lambda b, s, j: (0, j))
    else:
        invproj_spec = pl.BlockSpec((D, tn), lambda b, s, j: (0, j),
                                    pipeline_mode=pl.Buffered(1))

    # j (inv_proj column tiles) innermost: the (b, s, 0) attack block index does not
    # change across j so its DMA is not re-issued.  j is "arbitrary" so the v7x
    # megacore shards over B / row tiles only (no duplicated attack fetches).
    grid = (B, pl.cdiv(S, tm), pl.cdiv(D, tn))

    kernel = functools.partial(
        _adversary_kernel,
        cast_bf16=bool(use_bf16) and jnp.dtype(attack.dtype) != jnp.bfloat16)

    cost = pl.CostEstimate(
        flops=2 * B * S * D * D,
        transcendentals=0,
        bytes_accessed=int(2 * B * S * D * x_item + B * S * D * w_item
                           + D * D * w_item + B * S * 4))

    # TODO(synk): for very large D where even a single (D, TN) inv_proj slab cannot
    # fit, add a K-tiling grid axis (innermost, "arbitrary") with an f32 acc scratch.
    return pl.pallas_call(
        kernel,
        out_shape=jax.ShapeDtypeStruct((B, S, D), x.dtype),
        grid_spec=pltpu.PrefetchScalarGridSpec(
            num_scalar_prefetch=0,
            grid=grid,
            in_specs=[
                pl.BlockSpec((1, tm, 1), lambda b, s, j: (b, s, 0)),    # mask
                pl.BlockSpec((1, tm, tn), lambda b, s, j: (b, s, j)),   # x
                pl.BlockSpec((1, tm, D), lambda b, s, j: (b, s, 0)),    # attack (full K)
                invproj_spec,                                           # inv_proj
            ],
            out_specs=pl.BlockSpec((1, tm, tn), lambda b, s, j: (b, s, j)),
        ),
        compiler_params=pltpu.CompilerParams(
            dimension_semantics=("parallel", "parallel", "arbitrary"),
            vmem_limit_bytes=vmem_limit,
        ),
        cost_estimate=cost,
        input_output_aliases={1: 0} if donate_x else {},
    )(mask_i32, x, attack, inv_proj)


def clip_attack(attack, epsilon):
    # Mirrors WhitenedGDAdversary.clip_attack (runs once at init -> plain JAX glue).
    norms = jnp.linalg.norm(attack, axis=-1, keepdims=True)
    scale = jnp.maximum(norms / epsilon, 1.0)
    return attack / scale


if __name__ == "__main__":
    B, S, D = 2, 64, 128          # batch, seq, hidden (small; D lane-dense = 128)
    epsilon = 1.0

    key = jax.random.PRNGKey(0)
    k_proj, k_attack, k_mask, k_x = jax.random.split(key, 4)

    # Well-conditioned whitening matrix and its inverse (as in __init__ with proj given).
    proj = 2.0 * jnp.eye(D, dtype=jnp.float32) \
        + 0.05 * jax.random.normal(k_proj, (D, D), jnp.float32)
    inv_proj = jnp.linalg.inv(proj)

    # attack parameter ~ randn(B, S, D), clipped to the epsilon ball (as in __init__).
    attack = clip_attack(jax.random.normal(k_attack, (B, S, D), jnp.float32), epsilon)
    attack_mask = jax.random.bernoulli(k_mask, 0.5, (B, S))
    x = jax.random.normal(k_x, (B, S, D), jnp.float32)

    # Reference (pure JAX) check of the PyTorch semantics.
    unproj_ref = jnp.einsum("nd,bsn->bsd", inv_proj, attack,
                            precision=jax.lax.Precision.HIGHEST)
    ref = jnp.where(attack_mask[:, :S, None], x + unproj_ref.astype(x.dtype), x)

    # 1) auto-chosen tiles (inv_proj fully resident, single pipeline buffer).
    out = jax.block_until_ready(
        whitened_gd_adversary_forward(x, attack, inv_proj, attack_mask))
    assert jnp.allclose(out, ref, atol=5e-3, rtol=1e-3), "mismatch (auto tiles)"

    # 2) forced small row tiles to exercise the multi-step pipelined grid path.
    out_tiled = jax.block_until_ready(
        whitened_gd_adversary_forward(x, attack, inv_proj, attack_mask, row_tile=16))
    assert jnp.allclose(out_tiled, ref, atol=5e-3, rtol=1e-3), "mismatch (row_tile=16)"

    # 3) in-kernel bf16 cast path (bf16 MXU operands, f32 accumulation).
    out_bf16 = jax.block_until_ready(
        whitened_gd_adversary_forward(x, attack, inv_proj, attack_mask, use_bf16=True))
    assert jnp.allclose(out_bf16, ref, atol=5e-2, rtol=5e-2), "mismatch (use_bf16)"

    print("KERNEL_OK")
</pallas_src>

<mosaic_0001>
module attributes {stable_mosaic.version = 11 : i64} {
  func.func @_adversary_kernel(%arg0: i32, %arg1: i32, %arg2: i32, %arg3: memref<1x64x1xi32, #tpu.memory_space<vmem>>, %arg4: memref<1x64x128xf32, #tpu.memory_space<vmem>>, %arg5: memref<1x64x128xf32, #tpu.memory_space<vmem>>, %arg6: memref<128x128xf32, #tpu.memory_space<vmem>>, %arg7: memref<1x64x128xf32, #tpu.memory_space<vmem>>) attributes {dimension_semantics = [#tpu.dimension_semantics<parallel>, #tpu.dimension_semantics<parallel>, #tpu.dimension_semantics<arbitrary>], iteration_bounds = array<i64: 2, 1, 1>, scalar_prefetch = 0 : i64, scratch_operands = 0 : i64, tpu.core_type = #tpu.core_type<tc>, window_params = [{transform_indices = @transform_0, window_bounds = array<i64: 1, 64, 1>}, {transform_indices = @transform_1, window_bounds = array<i64: 1, 64, 128>}, {transform_indices = @transform_2, window_bounds = array<i64: 1, 64, 128>}, {pipeline_mode = #tpu.pipeline_mode<synchronous>, transform_indices = @transform_3, window_bounds = array<i64: 128, 128>}, {transform_indices = @transform_4, window_bounds = array<i64: 1, 64, 128>}]} {
    %c0 = arith.constant 0 : index
    %c0_0 = arith.constant 0 : index
    %c0_1 = arith.constant 0 : index
    %0 = vector.load %arg4[%c0, %c0_0, %c0_1] : memref<1x64x128xf32, #tpu.memory_space<vmem>>, vector<1x64x128xf32>
    %1 = vector.shape_cast %0 : vector<1x64x128xf32> to vector<64x128xf32>
    %c0_2 = arith.constant 0 : index
    %c0_3 = arith.constant 0 : index
    %c0_4 = arith.constant 0 : index
    %2 = vector.load %arg5[%c0_2, %c0_3, %c0_4] : memref<1x64x128xf32, #tpu.memory_space<vmem>>, vector<1x64x128xf32>
    %3 = vector.shape_cast %2 : vector<1x64x128xf32> to vector<64x128xf32>
    %c0_5 = arith.constant 0 : index
    %c0_6 = arith.constant 0 : index
    %4 = vector.load %arg6[%c0_5, %c0_6] : memref<128x128xf32, #tpu.memory_space<vmem>>, vector<128x128xf32>
    %cst = arith.constant dense<0.000000e+00> : vector<64x128xf32>
    %5 = tpu.matmul %3, %4, %cst {dimension_numbers = #tpu.dot_dimension_numbers<[1], [0], [0], [1], [0, 0, 1, 1], [], []>} : vector<64x128xf32>, vector<128x128xf32>, vector<64x128xf32> -> vector<64x128xf32>
    %c0_7 = arith.constant 0 : index
    %c0_8 = arith.constant 0 : index
    %c0_9 = arith.constant 0 : index
    %6 = vector.load %arg3[%c0_7, %c0_8, %c0_9] : memref<1x64x1xi32, #tpu.memory_space<vmem>>, vector<1x64x1xi32>
    %7 = vector.shape_cast %6 : vector<1x64x1xi32> to vector<64x1xi32>
    %8 = vector.shape_cast %7 : vector<64x1xi32> to vector<64x1xi32>
    %9 = vector.broadcast %8 : vector<64x1xi32> to vector<64x128xi32>
    %c0_i32 = arith.constant 0 : i32
    %10 = vector.broadcast %c0_i32 : i32 to vector<64x128xi32>
    %11 = arith.cmpi ne, %9, %10 : vector<64x128xi32>
    %12 = arith.addf %1, %5 : vector<64x128xf32>
    %13 = arith.select %11, %12, %1 : vector<64x128xi1>, vector<64x128xf32>
    %c0_10 = arith.constant 0 : index
    %c0_11 = arith.constant 0 : index
    %c0_12 = arith.constant 0 : index
    %14 = vector.load %arg7[%c0_10, %c0_11, %c0_12] : memref<1x64x128xf32, #tpu.memory_space<vmem>>, vector<1x64x128xf32>
    %15 = vector.shape_cast %14 : vector<1x64x128xf32> to vector<64x128xf32>
    %16 = vector.shape_cast %13 : vector<64x128xf32> to vector<1x64x128xf32>
    tpu.vector_store %arg7[%c0_10, %c0_11, %c0_12], %16 {strides = array<i32>} : memref<1x64x128xf32, #tpu.memory_space<vmem>>, vector<1x64x128xf32>,
    return
  }
  func.func @transform_0(%arg0: i32, %arg1: i32, %arg2: i32) -> (i32, i32, i32) {
    %c0_i32 = arith.constant 0 : i32
    %c0_i32_0 = arith.constant 0 : i32
    return %arg0, %arg1, %c0_i32 : i32, i32, i32
  }
  func.func @transform_1(%arg0: i32, %arg1: i32, %arg2: i32) -> (i32, i32, i32) {
    %c0_i32 = arith.constant 0 : i32
    return %arg0, %arg1, %arg2 : i32, i32, i32
  }
  func.func @transform_2(%arg0: i32, %arg1: i32, %arg2: i32) -> (i32, i32, i32) {
    %c0_i32 = arith.constant 0 : i32
    %c0_i32_0 = arith.constant 0 : i32
    return %arg0, %arg1, %c0_i32 : i32, i32, i32
  }
  func.func @transform_3(%arg0: i32, %arg1: i32, %arg2: i32) -> (i32, i32) {
    %c0_i32 = arith.constant 0 : i32
    %c0_i32_0 = arith.constant 0 : i32
    return %c0_i32, %arg2 : i32, i32
  }
  func.func @transform_4(%arg0: i32, %arg1: i32, %arg2: i32) -> (i32, i32, i32) {
    %c0_i32 = arith.constant 0 : i32
    return %arg0, %arg1, %arg2 : i32, i32, i32
  }
}

</mosaic_0001>

<llo_original>
// kernel: tpu_custom_call.1
$region0: #{tpu_custom_call.1}
  #allocation0 [shape = 'u32[]', space=smem, size = 0x4, offset = 0x4, fixed_abs, tag = 'smem constant byte address 0x4 - core index']
  #allocation1 [shape = 'u32[144,128]{1,0:T(1,128)}', space=vmem, size = 0x12000, scoped, tag = 'internal scratch']
  %s0 = inlined_call_operand.vmem [shape: s32[2,64,1], index: 0, kind: input, shape index: {}]
  %s1 = inlined_call_operand.vmem [shape: f32[2,64,128], index: 1, kind: input, shape index: {}]
  %s2 = inlined_call_operand.hbm [shape: f32[2,64,128], index: 2, kind: input, shape index: {}]
  %s3 = inlined_call_operand.hbm [shape: f32[128,128], index: 3, kind: input, shape index: {}]
  %s4 = inlined_call_operand.hbm [shape: f32[2,64,128], index: 4, kind: output, shape index: {}]
  %s5 = sld [smem:[#allocation0]]
  $region57: #{tpu_custom_call.1} parent=0
    _
  %s7 = ssub.s32 1, %s5
  %s8 = scalar_select 0, %s7, %s5
  $region1: #{tpu_custom_call.1} parent=0
    #allocation2 [shape = 'u8[65536]{0}', space=vmem, size = 0x10000, scoped, tag = 'input window, operand 2']
    #allocation3 [shape = 's32[2]{0}', space=sflag, size = 0x8, scoped, tag = 'scoped memory for tpu_custom_call.1']
    #allocation4 [shape = 's32[2]{0}', space=sflag, size = 0x8, scoped, tag = 'scoped memory for tpu_custom_call.1']
    #allocation5 [shape = 'u8[65536]{0}', space=vmem, size = 0x10000, scoped, tag = 'input window, operand 3, single buffered']
    #allocation6 [shape = 's32[1]{0}', space=sflag, size = 0x4, scoped, tag = 'scoped memory for tpu_custom_call.1']
    #allocation7 [shape = 'u8[65536]{0}', space=vmem, size = 0x10000, scoped, tag = 'output window, operand 0']
    %9 = vsyncpa [#allocation3], 0
    %s10 = scalar_lea.sflag [#allocation3], 1
    %11 = vsyncpa %s10, 0
    %12 = vsyncpa [#allocation6], 0
    %13 = vsyncpa [#allocation4], 0
    %s14 = scalar_lea.sflag [#allocation4], 1
    %15 = vsyncpa %s14, 0
    loop: start=0, step=1, limit=4
    $region2: #{tpu_custom_call.1} parent=1 // loop_pre_header
      _
    $region3: #{tpu_custom_call.1} parent=1 // loop_header
      %s17 = sphi 0, %s21
      %p18 = scmp.ge.s32.totalorder %s17, 4
      %s24 = sphi 0, %s43
      %s25 = sphi 0, %s39
      %s26 = sphi 0, %s35
      %s27 = sphi 0, %s24
      %s28 = sphi 0, %s25
      %s29 = sphi 0, %s26
      %s30 = sphi 0, %s27
      %s31 = sphi 0, %s28
      %s32 = sphi 0, %s29
      %s48 = sphi 0, %s50
      %s51 = sphi 0, %s48
      %s52 = sphi 0, %s51
      %s68 = sphi 0, %s52
      %s78 = sphi 0, %s80
      %s81 = sphi 0, %s78
      %s82 = sphi 0, %s81
      %s98 = sphi 0, %s82
      %s106 = sphi 0, %s108
      %s109 = sphi 0, %s106
      %s110 = sphi 0, %s109
      %s126 = sphi 0, %s110
      %s132 = sphi 0, %s134
      %s135 = sphi 0, %s132
      %s136 = sphi 0, %s135
      %s152 = sphi 0, %s136
      %s162 = sphi 0, %s164
      %s165 = sphi 0, %s162
      %s166 = sphi 0, %s165
      %s182 = sphi 0, %s166
    $region4: #{tpu_custom_call.1} parent=1 // loop_header_branch
      %20 = sbr.rel (%p18) target = $region8
    $region5: #{tpu_custom_call.1} parent=1 // loop_body
      %s22 = ssub.s32 %s17, 1
      %s23 = ssub.s32 %s17, 2
      %s33 = sadd.s32 1, %s26
      %p34 = scmp.ge.s32.totalorder %s33, 1
      %s35 = scalar_select %p34, 0, %s33
      %s36 = sadd.s32 1, %s25
      %s37 = scalar_select %p34, %s36, %s25
      %p38 = scmp.ge.s32.totalorder %s37, 1
      %s39 = scalar_select %p38, 0, %s37
      %s40 = sadd.s32 1, %s24
      %s41 = scalar_select %p38, %s40, %s24
      %p42 = scmp.ge.s32.totalorder %s41, 2
      %s43 = scalar_select %p42, 0, %s41
      %s44 = ssub.s32 %s24, %s43
      %s45 = ssub.s32 %s25, %s39
      %s46 = sor.u32 %s44, %s45
      %p47 = scmp.eq.s32.totalorder %s46, 0
      %s49 = sadd.s32 %s48, 1
      %s50 = scalar_select %p47, %s48, %s49
      %p53 = pneg %p47
      %p54 = scmp.eq.s32.totalorder %s17, 1
      %p55 = por %p53, %p54
      %p56 = scmp.ne.s32.totalorder %s48, %s51
      %p57 = scmp.eq.s32.totalorder %s17, 0
      %p58 = por %p56, %p57
      %p59 = scmp.ne.s32.totalorder %s48, %s51
      %p60 = scmp.eq.s32.totalorder %s22, 1
      %p61 = por %p59, %p60
      %p62 = scmp.ne.s32.totalorder %s51, %s52
      %p63 = scmp.eq.s32.totalorder %s22, 0
      %p64 = por %p62, %p63
      %p65 = scmp.ne.s32.totalorder %s51, %s52
      %p66 = scmp.eq.s32.totalorder %s23, 1
      %p67 = por %p65, %p66
      %p69 = scmp.ne.s32.totalorder %s52, %s68
      %p70 = scmp.eq.s32.totalorder %s23, 0
      %p71 = por %p69, %p70
      %s72 = ssub.s32 %s24, %s43
      %s73 = ssub.s32 %s25, %s39
      %s74 = sor.u32 %s72, %s73
      %s75 = ssub.s32 %s26, %s35
      %s76 = sor.u32 %s74, %s75
      %p77 = scmp.eq.s32.totalorder %s76, 0
      %s79 = sadd.s32 %s78, 1
      %s80 = scalar_select %p77, %s78, %s79
      %p83 = pneg %p77
      %p84 = scmp.eq.s32.totalorder %s17, 1
      %p85 = por %p83, %p84
      %p86 = scmp.ne.s32.totalorder %s78, %s81
      %p87 = scmp.eq.s32.totalorder %s17, 0
      %p88 = por %p86, %p87
      %p89 = scmp.ne.s32.totalorder %s78, %s81
      %p90 = scmp.eq.s32.totalorder %s22, 1
      %p91 = por %p89, %p90
      %p92 = scmp.ne.s32.totalorder %s81, %s82
      %p93 = scmp.eq.s32.totalorder %s22, 0
      %p94 = por %p92, %p93
      %p95 = scmp.ne.s32.totalorder %s81, %s82
      %p96 = scmp.eq.s32.totalorder %s23, 1
      %p97 = por %p95, %p96
      %p99 = scmp.ne.s32.totalorder %s82, %s98
      %p100 = scmp.eq.s32.totalorder %s23, 0
      %p101 = por %p99, %p100
      %s102 = ssub.s32 %s24, %s43
      %s103 = ssub.s32 %s25, %s39
      %s104 = sor.u32 %s102, %s103
      %p105 = scmp.eq.s32.totalorder %s104, 0
      %s107 = sadd.s32 %s106, 1
      %s108 = scalar_select %p105, %s106, %s107
      %p111 = pneg %p105
      %p112 = scmp.eq.s32.totalorder %s17, 1
      %p113 = por %p111, %p112
      %p114 = scmp.ne.s32.totalorder %s106, %s109
      %p115 = scmp.eq.s32.totalorder %s17, 0
      %p116 = por %p114, %p115
      %p117 = scmp.ne.s32.totalorder %s106, %s109
      %p118 = scmp.eq.s32.totalorder %s22, 1
      %p119 = por %p117, %p118
      %p120 = scmp.ne.s32.totalorder %s109, %s110
      %p121 = scmp.eq.s32.totalorder %s22, 0
      %p122 = por %p120, %p121
      %p123 = scmp.ne.s32.totalorder %s109, %s110
      %p124 = scmp.eq.s32.totalorder %s23, 1
      %p125 = por %p123, %p124
      %p127 = scmp.ne.s32.totalorder %s110, %s126
      %p128 = scmp.eq.s32.totalorder %s23, 0
      %p129 = por %p127, %p128
      %s130 = ssub.s32 %s26, %s35
      %p131 = scmp.eq.s32.totalorder %s130, 0
      %s133 = sadd.s32 %s132, 1
      %s134 = scalar_select %p131, %s132, %s133
      %p137 = pneg %p131
      %p138 = scmp.eq.s32.totalorder %s17, 1
      %p139 = por %p137, %p138
      %p140 = scmp.ne.s32.totalorder %s132, %s135
      %p141 = scmp.eq.s32.totalorder %s17, 0
      %p142 = por %p140, %p141
      %p143 = scmp.ne.s32.totalorder %s132, %s135
      %p144 = scmp.eq.s32.totalorder %s22, 1
      %p145 = por %p143, %p144
      %p146 = scmp.ne.s32.totalorder %s135, %s136
      %p147 = scmp.eq.s32.totalorder %s22, 0
      %p148 = por %p146, %p147
      %p149 = scmp.ne.s32.totalorder %s135, %s136
      %p150 = scmp.eq.s32.totalorder %s23, 1
      %p151 = por %p149, %p150
      %p153 = scmp.ne.s32.totalorder %s136, %s152
      %p154 = scmp.eq.s32.totalorder %s23, 0
      %p155 = por %p153, %p154
      %s156 = ssub.s32 %s24, %s43
      %s157 = ssub.s32 %s25, %s39
      %s158 = sor.u32 %s156, %s157
      %s159 = ssub.s32 %s26, %s35
      %s160 = sor.u32 %s158, %s159
      %p161 = scmp.eq.s32.totalorder %s160, 0
      %s163 = sadd.s32 %s162, 1
      %s164 = scalar_select %p161, %s162, %s163
      %p167 = pneg %p161
      %p168 = scmp.eq.s32.totalorder %s17, 1
      %p169 = por %p167, %p168
      %p170 = scmp.ne.s32.totalorder %s162, %s165
      %p171 = scmp.eq.s32.totalorder %s17, 0
      %p172 = por %p170, %p171
      %p173 = scmp.ne.s32.totalorder %s162, %s165
      %p174 = scmp.eq.s32.totalorder %s22, 1
      %p175 = por %p173, %p174
      %p176 = scmp.ne.s32.totalorder %s165, %s166
      %p177 = scmp.eq.s32.totalorder %s22, 0
      %p178 = por %p176, %p177
      %p179 = scmp.ne.s32.totalorder %s165, %s166
      %p180 = scmp.eq.s32.totalorder %s23, 1
      %p181 = por %p179, %p180
      %p183 = scmp.ne.s32.totalorder %s166, %s182
      %p184 = scmp.eq.s32.totalorder %s23, 0
      %p185 = por %p183, %p184
      %p186 = scmp.le.s32.totalorder 1, %s17
      %p187 = scmp.lt.s32.totalorder %s17, 3
      %p188 = pnand %p186, %p187
      %p189 = pneg %p188
      // Predicated region
      $region9: #{tpu_custom_call.1} parent=5 // pred_check
        _
      $region10: #{tpu_custom_call.1} parent=5 // pred_check_branch
        %191 = sbr.rel (%p188) target = $region12
      $region11: #{tpu_custom_call.1} parent=5 // pred_region
        %s192 = ssub.s32 %s17, 1
        // Predicated region
        $region13: #{tpu_custom_call.1} parent=11 // pred_check
          %p193 = pneg %p148
        $region14: #{tpu_custom_call.1} parent=11 // pred_check_branch
          %195 = sbr.rel (%p193) target = $region16
        $region15: #{tpu_custom_call.1} parent=11 // pred_region
          %s197 = ssub.s32 2048, 2048
          %198 = vsyncadd [#allocation6], %s197
          %s199 = smul.addr %s29, 128
          %s200 = scalar_lea.hbm %s3, %s199
          %s201 = sshll.u32 [#allocation5], 4
          %s202 = int_to_ptr.vmem [resolvable:$true] %s201
          %207 = dma.hbm_to_vmem [thread:$0]  %s200, 2048, %s202, [#allocation6], 128, 128, 8
        $region16: #{tpu_custom_call.1} parent=11 // pred_fallthru
          _
      $region12: #{tpu_custom_call.1} parent=5 // pred_fallthru
        _
      %p208 = scmp.lt.s32.totalorder %s17, 2
      // Predicated region
      $region17: #{tpu_custom_call.1} parent=5 // pred_check
        %p209 = pneg %p208
      $region18: #{tpu_custom_call.1} parent=5 // pred_check_branch
        %211 = sbr.rel (%p209) target = $region20
      $region19: #{tpu_custom_call.1} parent=5 // pred_region
        // Predicated region
        $region21: #{tpu_custom_call.1} parent=19 // pred_check
          %p212 = pneg %p58
        $region22: #{tpu_custom_call.1} parent=19 // pred_check_branch
          %214 = sbr.rel (%p212) target = $region24
        $region23: #{tpu_custom_call.1} parent=19 // pred_region
          %s215 = smul.u32 8, %s25
          %p216 = scmp.lt.s32.totalorder %s24, 1
          %s217 = scalar_select %p216, %s24, 1
          %p218 = scmp.lt.s32.totalorder %s215, 7
          %s219 = scalar_select %p218, %s215, 7
          %s220 = smul.addr %s217, 8
          %s221 = sadd.s32 %s219, %s220
          %s222 = smul.addr %s221, 8
          %s223 = scalar_lea.vmem %s0, %s222
          %s224 = smul.u32 8, %s25
        $region24: #{tpu_custom_call.1} parent=19 // pred_fallthru
          _
        // Predicated region
        $region25: #{tpu_custom_call.1} parent=19 // pred_check
          %p225 = pneg %p88
        $region26: #{tpu_custom_call.1} parent=19 // pred_check_branch
          %227 = sbr.rel (%p225) target = $region28
        $region27: #{tpu_custom_call.1} parent=19 // pred_region
          %s228 = smul.u32 8, %s25
          %p229 = scmp.lt.s32.totalorder %s24, 1
          %s230 = scalar_select %p229, %s24, 1
          %p231 = scmp.lt.s32.totalorder %s228, 7
          %s232 = scalar_select %p231, %s228, 7
          %p233 = scmp.lt.s32.totalorder %s26, 0
          %s234 = scalar_select %p233, %s26, 0
          %s235 = sadd.s32 %s234, %s232
          %s236 = smul.addr %s230, 8
          %s237 = sadd.s32 %s235, %s236
          %s238 = smul.addr %s237, 8
          %s239 = scalar_lea.vmem %s1, %s238
          %s240 = smul.u32 8, %s25
        $region28: #{tpu_custom_call.1} parent=19 // pred_fallthru
          _
        // Predicated region
        $region29: #{tpu_custom_call.1} parent=19 // pred_check
          %p241 = pneg %p116
        $region30: #{tpu_custom_call.1} parent=19 // pred_check_branch
          %243 = sbr.rel (%p241) target = $region32
        $region31: #{tpu_custom_call.1} parent=19 // pred_region
          %s244 = sand.u32 %s106, 1
          %s245 = scalar_lea.sflag [#allocation3], %s244
          %s246 = sand.u32 %s106, 1
          %s247 = smul.addr %s246, 64
          %s248 = scalar_lea.vmem [#allocation2], %s247
          %s249 = smul.u32 8, %s25
          %s251 = ssub.s32 1024, 1024
          %252 = vsyncadd %s245, %s251
          %s253 = smul.addr %s24, 8
          %s254 = sadd.s32 %s249, %s253
          %s255 = smul.addr %s254, 128
          %s256 = scalar_lea.hbm %s2, %s255
          %s257 = sshll.u32 %s248, 4
          %s258 = int_to_ptr.vmem [resolvable:$true] %s257
          %263 = dma.hbm_to_vmem [thread:$0]  %s256, 1024, %s258, %s245, 128, 128, 8
        $region32: #{tpu_custom_call.1} parent=19 // pred_fallthru
          _
      $region20: #{tpu_custom_call.1} parent=5 // pred_fallthru
        _
      %p264 = scmp.le.s32.totalorder 1, %s17
      %p265 = scmp.lt.s32.totalorder %s17, 3
      %p266 = pnand %p264, %p265
      %p267 = pneg %p266
      // Predicated region
      $region33: #{tpu_custom_call.1} parent=5 // pred_check
        _
      $region34: #{tpu_custom_call.1} parent=5 // pred_check_branch
        %269 = sbr.rel (%p266) target = $region36
      $region35: #{tpu_custom_call.1} parent=5 // pred_region
        %s270 = ssub.s32 %s17, 1
        %s271 = sand.u32 %s109, 1
        %s272 = scalar_lea.sflag [#allocation3], %s271
        %s273 = sand.u32 %s109, 1
        %s274 = smul.addr %s273, 64
        %s275 = scalar_lea.vmem [#allocation2], %s274
        // Predicated region
        $region37: #{tpu_custom_call.1} parent=35 // pred_check
          %p276 = pneg %p122
        $region38: #{tpu_custom_call.1} parent=35 // pred_check_branch
          %278 = sbr.rel (%p276) target = $region40
        $region39: #{tpu_custom_call.1} parent=35 // pred_region
          %279 = dma.done %s272, 1024
        $region40: #{tpu_custom_call.1} parent=35 // pred_fallthru
          _
        // Predicated region
        $region41: #{tpu_custom_call.1} parent=35 // pred_check
          %p280 = pneg %p148
        $region42: #{tpu_custom_call.1} parent=35 // pred_check_branch
          %282 = sbr.rel (%p280) target = $region44
        $region43: #{tpu_custom_call.1} parent=35 // pred_region
          %283 = dma.done [#allocation6], 2048
        $region44: #{tpu_custom_call.1} parent=35 // pred_fallthru
          _
        %s284 = smul.u32 8, %s28
        %p285 = scmp.lt.s32.totalorder %s27, 1
        %s286 = scalar_select %p285, %s27, 1
        %p287 = scmp.lt.s32.totalorder %s284, 7
        %s288 = scalar_select %p287, %s284, 7
        %s289 = smul.addr %s286, 8
        %s290 = sadd.s32 %s288, %s289
        %s291 = smul.addr %s290, 8
        %s292 = scalar_lea.vmem %s0, %s291
        %p293 = pneg %p64
        %p294 = pneg %p61
        %s295 = smul.u32 8, %s28
        %p296 = scmp.lt.s32.totalorder %s27, 1
        %s297 = scalar_select %p296, %s27, 1
        %p298 = scmp.lt.s32.totalorder %s295, 7
        %s299 = scalar_select %p298, %s295, 7
        %p300 = scmp.lt.s32.totalorder %s29, 0
        %s301 = scalar_select %p300, %s29, 0
        %s302 = sadd.s32 %s301, %s299
        %s303 = smul.addr %s297, 8
        %s304 = sadd.s32 %s302, %s303
        %s305 = smul.addr %s304, 8
        %s306 = scalar_lea.vmem %s1, %s305
        %p307 = pneg %p94
        %p308 = pneg %p91
        %s309 = sand.u32 %s109, 1
        %s310 = scalar_lea.sflag [#allocation3], %s309
        %s311 = sand.u32 %s109, 1
        %s312 = smul.addr %s311, 64
        %s313 = scalar_lea.vmem [#allocation2], %s312
        %p314 = pneg %p122
        %p315 = pneg %p119
        %p316 = pneg %p148
        %p317 = pneg %p145
        %p318 = pneg %p178
        %p319 = pneg %p175
        %s320 = sand.u32 %s165, 1
        %s321 = scalar_lea.sflag [#allocation4], %s320
        %s322 = sand.u32 %s165, 1
        %s323 = smul.addr %s322, 64
        %s324 = scalar_lea.vmem [#allocation7], %s323
        %s325 = smul.u32 8, %s28
        %p326 = scmp.lt.s32.totalorder %s27, 1
        %s327 = scalar_select %p326, %s27, 1
        %p328 = scmp.lt.s32.totalorder %s325, 7
        %s329 = scalar_select %p328, %s325, 7
        %s330 = smul.addr %s327, 8
        %s331 = sadd.s32 %s329, %s330
        %s332 = smul.addr %s331, 8
        %s333 = scalar_lea.vmem %s0, %s332
        %s334 = smul.u32 8, %s28
        %s335 = smul.u32 8, %s28
        %p336 = scmp.lt.s32.totalorder %s27, 1
        %s337 = scalar_select %p336, %s27, 1
        %p338 = scmp.lt.s32.totalorder %s335, 7
        %s339 = scalar_select %p338, %s335, 7
        %p340 = scmp.lt.s32.totalorder %s29, 0
        %s341 = scalar_select %p340, %s29, 0
        %s342 = sadd.s32 %s341, %s339
        %s343 = smul.addr %s337, 8
        %s344 = sadd.s32 %s342, %s343
        %s345 = smul.addr %s344, 8
        %s346 = scalar_lea.vmem %s1, %s345
        %s347 = smul.u32 8, %s28
        %s348 = smul.u32 8, %s28
        %s349 = smul.u32 8, %s28
        %v350 = vld [vmem:[%s346] sm:$0xff]
        %v351 = vld [vmem:[%s346 + $0x8] sm:$0xff]
        %v352 = vld [vmem:[%s346 + $0x10] sm:$0xff]
        %v353 = vld [vmem:[%s346 + $0x18] sm:$0xff]
        %v354 = vld [vmem:[%s346 + $0x20] sm:$0xff]
        %v355 = vld [vmem:[%s346 + $0x28] sm:$0xff]
        %v356 = vld [vmem:[%s346 + $0x30] sm:$0xff]
        %v357 = vld [vmem:[%s346 + $0x38] sm:$0xff]
        %v358 = vld [vmem:[%s275] sm:$0xff]
        %v359 = vld [vmem:[%s275 + $0x8] sm:$0xff]
        %v360 = vld [vmem:[%s275 + $0x10] sm:$0xff]
        %v361 = vld [vmem:[%s275 + $0x18] sm:$0xff]
        %v362 = vld [vmem:[%s275 + $0x20] sm:$0xff]
        %v363 = vld [vmem:[%s275 + $0x28] sm:$0xff]
        %v364 = vld [vmem:[%s275 + $0x30] sm:$0xff]
        %v365 = vld [vmem:[%s275 + $0x38] sm:$0xff]
        %v366 = vld [vmem:[#allocation5] sm:$0xff]
        %v367 = vld [vmem:[#allocation5 + $0x8] sm:$0xff]
        %v368 = vld [vmem:[#allocation5 + $0x10] sm:$0xff]
        %v369 = vld [vmem:[#allocation5 + $0x18] sm:$0xff]
        %v370 = vld [vmem:[#allocation5 + $0x20] sm:$0xff]
        %v371 = vld [vmem:[#allocation5 + $0x28] sm:$0xff]
        %v372 = vld [vmem:[#allocation5 + $0x30] sm:$0xff]
        %v373 = vld [vmem:[#allocation5 + $0x38] sm:$0xff]
        %v374 = vld [vmem:[#allocation5 + $0x40] sm:$0xff]
        %v375 = vld [vmem:[#allocation5 + $0x48] sm:$0xff]
        %v376 = vld [vmem:[#allocation5 + $0x50] sm:$0xff]
        %v377 = vld [vmem:[#allocation5 + $0x58] sm:$0xff]
        %v378 = vld [vmem:[#allocation5 + $0x60] sm:$0xff]
        %v379 = vld [vmem:[#allocation5 + $0x68] sm:$0xff]
        %v380 = vld [vmem:[#allocation5 + $0x70] sm:$0xff]
        %v381 = vld [vmem:[#allocation5 + $0x78] sm:$0xff]
        %382 = vmatprep.subr.mxu0 0.0
        %383 = vmatpush1.msra.mxu0 %v366
        %384 = vmatprep.subr.mxu0 0.0
        %385 = vmatpush1.msra.mxu0 %v367
        %386 = vmatprep.subr.mxu0 0.0
        %387 = vmatpush1.msra.mxu0 %v368
        %388 = vmatprep.subr.mxu0 0.0
        %389 = vmatpush1.msra.mxu0 %v369
        %390 = vmatprep.subr.mxu0 0.0
        %391 = vmatpush1.msra.mxu0 %v370
        %392 = vmatprep.subr.mxu0 0.0
        %393 = vmatpush1.msra.mxu0 %v371
        %394 = vmatprep.subr.mxu0 0.0
        %395 = vmatpush1.msra.mxu0 %v372
        %396 = vmatprep.subr.mxu0 0.0
        %397 = vmatpush1.msra.mxu0 %v373
        %398 = vmatprep.subr.mxu0 0.0
        %399 = vmatpush1.msra.mxu0 %v374
        %400 = vmatprep.subr.mxu0 0.0
        %401 = vmatpush1.msra.mxu0 %v375
        %402 = vmatprep.subr.mxu0 0.0
        %403 = vmatpush1.msra.mxu0 %v376
        %404 = vmatprep.subr.mxu0 0.0
        %405 = vmatpush1.msra.mxu0 %v377
        %406 = vmatprep.subr.mxu0 0.0
        %407 = vmatpush1.msra.mxu0 %v378
        %408 = vmatprep.subr.mxu0 0.0
        %409 = vmatpush1.msra.mxu0 %v379
        %410 = vmatprep.subr.mxu0 0.0
        %411 = vmatpush1.msra.mxu0 %v380
        %412 = vmatprep.subr.mxu0 0.0
        %413 = vmatpush1.msra.mxu0 %v381
        %414 = vmatprep.subr.mxu0 0.0
        %415 = vmatpush1.msra.mxu0 0.0
        %416 = vmatprep.subr.mxu0 0.0
        %417 = vmatpush1.msra.mxu0 0.0
        %418 = vmatprep.subr.mxu0 0.0
        %419 = vmatpush1.msra.mxu0 0.0
        %420 = vmatprep.subr.mxu0 0.0
        %421 = vmatpush1.msra.mxu0 0.0
        %422 = vmatprep.subr.mxu0 0.0
        %423 = vmatpush1.msra.mxu0 0.0
        %424 = vmatprep.subr.mxu0 0.0
        %425 = vmatpush1.msra.mxu0 0.0
        %426 = vmatprep.subr.mxu0 0.0
        %427 = vmatpush1.msra.mxu0 0.0
        %428 = vmatprep.subr.mxu0 0.0
        %429 = vmatpush1.msra.mxu0 0.0
        %430 = vmatprep.subr.mxu0 0.0
        %431 = vmatpush1.msra.mxu0 0.0
        %432 = vmatprep.subr.mxu0 0.0
        %433 = vmatpush1.msra.mxu0 0.0
        %434 = vmatprep.subr.mxu0 0.0
        %435 = vmatpush1.msra.mxu0 0.0
        %436 = vmatprep.subr.mxu0 0.0
        %437 = vmatpush1.msra.mxu0 0.0
        %438 = vmatprep.subr.mxu0 0.0
        %439 = vmatpush1.msra.mxu0 0.0
        %440 = vmatprep.subr.mxu0 0.0
        %441 = vmatpush1.msra.mxu0 0.0
        %442 = vmatprep.subr.mxu0 0.0
        %443 = vmatpush1.msra.mxu0 0.0
        %444 = vmatprep.subr.mxu0 0.0
        %445 = vmatpush1.msra.mxu0 0.0
        %446 = vmatprep.mubr.f32.mxu0 0.0
        %447 = vmatmul.mubr.f32.gmra.mrb[0].mxu0 %v358
        %v448 = vpop.f32.mrb[0].mxu0
        %v449 = vadd.f32 0.0, %v448
        %v450 = vpop.f32.mrb[0].mxu0
        %451 = vmatprep.mubr.f32.mxu0 0.0
        %452 = vmatmul.mubr.f32.gmra.mrb[0].mxu0 %v359
        %v453 = vpop.f32.mrb[0].mxu0
        %v454 = vadd.f32 0.0, %v453
        %v455 = vpop.f32.mrb[0].mxu0
        %456 = vmatprep.mubr.f32.mxu0 0.0
        %457 = vmatmul.mubr.f32.gmra.mrb[0].mxu0 %v360
        %v458 = vpop.f32.mrb[0].mxu0
        %v459 = vadd.f32 0.0, %v458
        %v460 = vpop.f32.mrb[0].mxu0
        %461 = vmatprep.mubr.f32.mxu0 0.0
        %462 = vmatmul.mubr.f32.gmra.mrb[0].mxu0 %v361
        %v463 = vpop.f32.mrb[0].mxu0
        %v464 = vadd.f32 0.0, %v463
        %v465 = vpop.f32.mrb[0].mxu0
        %466 = vmatprep.mubr.f32.mxu0 0.0
        %467 = vmatmul.mubr.f32.gmra.mrb[0].mxu0 %v362
        %v468 = vpop.f32.mrb[0].mxu0
        %v469 = vadd.f32 0.0, %v468
        %v470 = vpop.f32.mrb[0].mxu0
        %471 = vmatprep.mubr.f32.mxu0 0.0
        %472 = vmatmul.mubr.f32.gmra.mrb[0].mxu0 %v363
        %v473 = vpop.f32.mrb[0].mxu0
        %v474 = vadd.f32 0.0, %v473
        %v475 = vpop.f32.mrb[0].mxu0
        %476 = vmatprep.mubr.f32.mxu0 0.0
        %477 = vmatmul.mubr.f32.gmra.mrb[0].mxu0 %v364
        %v478 = vpop.f32.mrb[0].mxu0
        %v479 = vadd.f32 0.0, %v478
        %v480 = vpop.f32.mrb[0].mxu0
        %481 = vmatprep.mubr.f32.mxu0 0.0
        %482 = vmatmul.mubr.f32.gmra.mrb[0].mxu0 %v365
        %v483 = vpop.f32.mrb[0].mxu0
        %v484 = vadd.f32 0.0, %v483
        %v485 = vpop.f32.mrb[0].mxu0
        %486 = vdwg.mxu0
        %v487 = vld [vmem:[%s333] sm:$0xff]
        %v488 = vld [vmem:[%s333 + $0x8] sm:$0xff]
        %v489 = vld [vmem:[%s333 + $0x10] sm:$0xff]
        %v490 = vld [vmem:[%s333 + $0x18] sm:$0xff]
        %v491 = vld [vmem:[%s333 + $0x20] sm:$0xff]
        %v492 = vld [vmem:[%s333 + $0x28] sm:$0xff]
        %v493 = vld [vmem:[%s333 + $0x30] sm:$0xff]
        %v494 = vld [vmem:[%s333 + $0x38] sm:$0xff]
        %495 = vset.pattern.permute.xlu0 0
        %496 = vperm.xlu0 %495, %v487
        %v497 = vpop.permute.xlu0 %496
        %498 = vset.pattern.permute.xlu0 0
        %499 = vperm.xlu0 %498, %v488
        %v500 = vpop.permute.xlu0 %499
        %501 = vset.pattern.permute.xlu0 0
        %502 = vperm.xlu0 %501, %v489
        %v503 = vpop.permute.xlu0 %502
        %504 = vset.pattern.permute.xlu0 0
        %505 = vperm.xlu0 %504, %v490
        %v506 = vpop.permute.xlu0 %505
        %507 = vset.pattern.permute.xlu0 0
        %508 = vperm.xlu0 %507, %v491
        %v509 = vpop.permute.xlu0 %508
        %510 = vset.pattern.permute.xlu0 0
        %511 = vperm.xlu0 %510, %v492
        %v512 = vpop.permute.xlu0 %511
        %513 = vset.pattern.permute.xlu0 0
        %514 = vperm.xlu0 %513, %v493
        %v515 = vpop.permute.xlu0 %514
        %516 = vset.pattern.permute.xlu0 0
        %517 = vperm.xlu0 %516, %v494
        %v518 = vpop.permute.xlu0 %517
        %vm519 = vcmp.ne.s32.totalorder %v497, 0
        %vm520 = vcmp.ne.s32.totalorder %v500, 0
        %vm521 = vcmp.ne.s32.totalorder %v503, 0
        %vm522 = vcmp.ne.s32.totalorder %v506, 0
        %vm523 = vcmp.ne.s32.totalorder %v509, 0
        %vm524 = vcmp.ne.s32.totalorder %v512, 0
        %vm525 = vcmp.ne.s32.totalorder %v515, 0
        %vm526 = vcmp.ne.s32.totalorder %v518, 0
        %v527 = vadd.f32 %v350, %v449
        %v528 = vadd.f32 %v351, %v454
        %v529 = vadd.f32 %v352, %v459
        %v530 = vadd.f32 %v353, %v464
        %v531 = vadd.f32 %v354, %v469
        %v532 = vadd.f32 %v355, %v474
        %v533 = vadd.f32 %v356, %v479
        %v534 = vadd.f32 %v357, %v484
        %v535 = vsel %vm519, %v527, %v350
        %v536 = vsel %vm520, %v528, %v351
        %v537 = vsel %vm521, %v529, %v352
        %v538 = vsel %vm522, %v530, %v353
        %v539 = vsel %vm523, %v531, %v354
        %v540 = vsel %vm524, %v532, %v355
        %v541 = vsel %vm525, %v533, %v356
        %v542 = vsel %vm526, %v534, %v357
        %543 = vst [vmem:[%s324] sm:$0xff] %v535
        %544 = vst [vmem:[%s324 + $0x8] sm:$0xff] %v536
        %545 = vst [vmem:[%s324 + $0x10] sm:$0xff] %v537
        %546 = vst [vmem:[%s324 + $0x18] sm:$0xff] %v538
        %547 = vst [vmem:[%s324 + $0x20] sm:$0xff] %v539
        %548 = vst [vmem:[%s324 + $0x28] sm:$0xff] %v540
        %549 = vst [vmem:[%s324 + $0x30] sm:$0xff] %v541
        %550 = vst [vmem:[%s324 + $0x38] sm:$0xff] %v542
        %s551 = sand.u32 %s165, 1
        %s552 = scalar_lea.sflag [#allocation4], %s551
        %s553 = sand.u32 %s165, 1
        %s554 = smul.addr %s553, 64
        %s555 = scalar_lea.vmem [#allocation7], %s554
        // Predicated region
        $region45: #{tpu_custom_call.1} parent=35 // pred_check
          %p556 = pneg %p175
        $region46: #{tpu_custom_call.1} parent=35 // pred_check_branch
          %558 = sbr.rel (%p556) target = $region48
        $region47: #{tpu_custom_call.1} parent=35 // pred_region
          %s559 = smul.u32 8, %s28
          %s561 = ssub.s32 1024, 1024
          %562 = vsyncadd %s552, %s561
          %s563 = sadd.s32 %s29, %s559
          %s564 = smul.addr %s27, 8
          %s565 = sadd.s32 %s563, %s564
          %s566 = smul.addr %s565, 128
          %s567 = scalar_lea.hbm %s4, %s566
          %s568 = sshll.u32 %s555, 4
          %s569 = int_to_ptr.vmem [resolvable:$true] %s568
          %574 = dma.vmem_to_hbm [thread:$0]  %s569, 1024, %s567, %s552, 128, 128, 8
        $region48: #{tpu_custom_call.1} parent=35 // pred_fallthru
          _
      $region36: #{tpu_custom_call.1} parent=5 // pred_fallthru
        _
      %p575 = scmp.le.s32.totalorder 2, %s17
      // Predicated region
      $region49: #{tpu_custom_call.1} parent=5 // pred_check
        %p576 = pneg %p575
      $region50: #{tpu_custom_call.1} parent=5 // pred_check_branch
        %578 = sbr.rel (%p576) target = $region52
      $region51: #{tpu_custom_call.1} parent=5 // pred_region
        %s579 = ssub.s32 %s17, 2
        // Predicated region
        $region53: #{tpu_custom_call.1} parent=51 // pred_check
          %p580 = pneg %p181
        $region54: #{tpu_custom_call.1} parent=51 // pred_check_branch
          %582 = sbr.rel (%p580) target = $region56
        $region55: #{tpu_custom_call.1} parent=51 // pred_region
          %s583 = sand.u32 %s166, 1
          %s584 = scalar_lea.sflag [#allocation4], %s583
          %s585 = sand.u32 %s166, 1
          %s586 = smul.addr %s585, 64
          %s587 = scalar_lea.vmem [#allocation7], %s586
          %588 = dma.done %s584, 1024
        $region56: #{tpu_custom_call.1} parent=51 // pred_fallthru
          _
      $region52: #{tpu_custom_call.1} parent=5 // pred_fallthru
        _
    $region6: #{tpu_custom_call.1} parent=1 // loop_footer
      %s21 = sadd.s32 1, %s17
    $region7: #{tpu_custom_call.1} parent=1 // loop_footer_branch
      %16 = sbr.rel target = $region3
    $region8: #{tpu_custom_call.1} parent=1 // loop_exit
      _
    %589 = vsyncpa [#allocation3], 1
    %s590 = scalar_lea.sflag [#allocation3], 1
    %591 = vsyncpa %s590, 1
    %592 = vsyncpa [#allocation6], 1
    %593 = vsyncpa [#allocation4], 1
    %s594 = scalar_lea.sflag [#allocation4], 1
    %595 = vsyncpa %s594, 1

</llo_original>
